<compile_context>
chip_gen: v7x
topology: tpu7x:2x2x1
jax: 0.10.0
libtpu: 0.0.40
codegen_flags: <defaults>
</compile_context>

<pallas_src>
import jax
import jax.numpy as jnp
from jax.experimental import pallas as pl
from jax.experimental.pallas import tpu as pltpu


def _round_up(x, m):
    return ((x + m - 1) // m) * m


def _accent_matmul_kernel(x_ref, w_ref, o_ref):
    # One (tm, K) @ (K, tn) MXU matmul per grid point, f32 accumulation.
    o_ref[...] = jnp.dot(
        x_ref[...], w_ref[...], preferred_element_type=jnp.float32
    ).astype(o_ref.dtype)


def accent_to_gpt2_tokenizer(
    x,
    accent_to_word_transform,
    *,
    compute_dtype=jnp.bfloat16,
    out_dtype=None,
    tm_max=512,
    tn_max=2048,
    use_pallas=None,
    vmem_limit_bytes=None,
):
    """Pallas equivalent of AccentToGtp2Tokenizer.forward.

    x: [seq_len, batch, accent_types] float
    accent_to_word_transform: [accent_types, subwords] float
    returns: [seq_len, batch, subwords] in `out_dtype`

    compute_dtype: operand dtype fed to the MXU. bfloat16 (default) is
      bit-exact for the tokenizer's real use (one-hot x, 0/1 matrix; f32
      accumulation) and halves HBM traffic. Use float32 to match torch.matmul
      exactly for arbitrary soft inputs.
    out_dtype: output dtype; defaults to compute_dtype (bf16 output is the
      single biggest win on this output-write-bound kernel).
    use_pallas: None = auto (fall back to jnp.matmul below ~one tile of work),
      True/False = force.
    """
    seq_len, batch, accent_types = x.shape
    k, subwords = accent_to_word_transform.shape
    assert k == accent_types

    if out_dtype is None:
        out_dtype = compute_dtype

    m = seq_len * batch
    n = subwords

    # ---- tile sizes (lane/sublane aligned; cdiv grid masks the edge) -------
    tm_max = max(8, _round_up(tm_max, 8))
    tn_max = max(128, _round_up(tn_max, 128))
    tm = min(tm_max, _round_up(m, 8))
    tn = min(tn_max, _round_up(n, 128))

    x2d = x.reshape(m, accent_types).astype(compute_dtype)   # free reshape
    w = accent_to_word_transform.astype(compute_dtype)

    if use_pallas is None:
        # Below ~one full output tile of work the fixed pallas_call cost wins.
        use_pallas = (m * n) >= (tm * tn)

    if not use_pallas:
        out2d = jnp.matmul(
            x2d, w, preferred_element_type=jnp.float32
        ).astype(out_dtype)
        return out2d.reshape(seq_len, batch, subwords)

    n_tiles = pl.cdiv(n, tn)
    m_tiles = pl.cdiv(m, tm)
    # N outer (W revisited once per N tile, core-split axis has many tiles),
    # M inner.
    grid = (n_tiles, m_tiles)

    in_bytes = jnp.dtype(compute_dtype).itemsize
    out_bytes = jnp.dtype(out_dtype).itemsize
    cost = pl.CostEstimate(
        flops=2 * m * accent_types * n,
        transcendentals=0,
        bytes_accessed=(
            n_tiles * m * accent_types * in_bytes   # x re-read once per N tile
            + accent_types * n * in_bytes           # W read exactly once
            + m * n * out_bytes                     # output write (dominant)
        ),
    )

    compiler_params = pltpu.CompilerParams(
        dimension_semantics=("parallel", "parallel"),
        vmem_limit_bytes=vmem_limit_bytes,
    )

    out2d = pl.pallas_call(
        _accent_matmul_kernel,
        out_shape=jax.ShapeDtypeStruct((m, n), out_dtype),
        grid=grid,
        in_specs=[
            # K (~16) is tiny -> un-tiled (block == full dim).
            pl.BlockSpec((tm, accent_types), lambda j, i: (i, 0)),
            pl.BlockSpec((accent_types, tn), lambda j, i: (0, j)),
        ],
        out_specs=pl.BlockSpec((tm, tn), lambda j, i: (i, j)),
        compiler_params=compiler_params,
        cost_estimate=cost,
    )(x2d, w)

    return out2d.reshape(seq_len, batch, subwords)


def make_params(accent_types, subwords, key):
    """Deterministic stand-in for the AccentTokenizer matrix.

    The PyTorch module receives `matrix` of shape [subwords, accent_types]
    and stores matrix.T (shape [accent_types, subwords]) as float32.
    """
    matrix = jax.random.bernoulli(
        key, p=0.25, shape=(subwords, accent_types)
    ).astype(jnp.float32)
    return matrix.T  # [accent_types, subwords]


if __name__ == "__main__":
    key = jax.random.PRNGKey(0)
    k_ids, k_w, k_ids2, k_w2 = jax.random.split(key, 4)

    # ---- Pallas path: small but multi-tile, deliberately non-aligned shapes
    # (m=200 not a multiple of tm=64, n=300 not a multiple of tn=128) to
    # exercise the cdiv-grid edge masking.
    seq_len, batch, accent_types, subwords = 50, 4, 16, 300
    ids = jax.random.randint(k_ids, (seq_len, batch), 0, accent_types)
    x = jax.nn.one_hot(ids, accent_types, dtype=jnp.float32)   # [S, B, A]
    w = make_params(accent_types, subwords, k_w)                # [A, V]
    ref = jnp.matmul(x, w)

    # Default bf16 path (exact here: one-hot x, 0/1 matrix, f32 accumulation).
    out_bf16 = accent_to_gpt2_tokenizer(
        x, w, tm_max=64, tn_max=128, use_pallas=True
    )
    out_bf16 = jax.block_until_ready(out_bf16)
    assert out_bf16.shape == (seq_len, batch, subwords)
    assert out_bf16.dtype == jnp.bfloat16
    assert jnp.allclose(out_bf16.astype(jnp.float32), ref, atol=1e-5, rtol=1e-5)

    # Exact f32 path (torch.matmul semantics for arbitrary float inputs).
    out_f32 = accent_to_gpt2_tokenizer(
        x, w, compute_dtype=jnp.float32, tm_max=64, tn_max=128, use_pallas=True
    )
    out_f32 = jax.block_until_ready(out_f32)
    assert out_f32.dtype == jnp.float32
    assert jnp.allclose(out_f32, ref, atol=1e-5, rtol=1e-5)

    # Tiny-shape auto fallback (plain jnp.matmul; a single-tile pallas_call
    # would be dominated by fixed launch/DMA setup cost).
    seq2, batch2, sub2 = 8, 2, 32
    ids2 = jax.random.randint(k_ids2, (seq2, batch2), 0, accent_types)
    x2 = jax.nn.one_hot(ids2, accent_types, dtype=jnp.float32)
    w2 = make_params(accent_types, sub2, k_w2)
    out_small = jax.block_until_ready(accent_to_gpt2_tokenizer(x2, w2))
    assert out_small.shape == (seq2, batch2, sub2)
    assert jnp.allclose(
        out_small.astype(jnp.float32), jnp.matmul(x2, w2), atol=1e-5, rtol=1e-5
    )

    print("KERNEL_OK")
</pallas_src>

<mosaic_0001>
module attributes {stable_mosaic.version = 11 : i64} {
  func.func @_accent_matmul_kernel(%arg0: i32, %arg1: i32, %arg2: memref<64x16xbf16, #tpu.memory_space<vmem>>, %arg3: memref<16x128xbf16, #tpu.memory_space<vmem>>, %arg4: memref<64x128xbf16, #tpu.memory_space<vmem>>) attributes {dimension_semantics = [#tpu.dimension_semantics<parallel>, #tpu.dimension_semantics<parallel>], iteration_bounds = array<i64: 3, 4>, scalar_prefetch = 0 : i64, scratch_operands = 0 : i64, tpu.core_type = #tpu.core_type<tc>, window_params = [{transform_indices = @transform_0, window_bounds = array<i64: 64, 16>}, {transform_indices = @transform_1, window_bounds = array<i64: 16, 128>}, {transform_indices = @transform_2, window_bounds = array<i64: 64, 128>}]} {
    %c0 = arith.constant 0 : index
    %c0_0 = arith.constant 0 : index
    %0 = vector.load %arg2[%c0, %c0_0] : memref<64x16xbf16, #tpu.memory_space<vmem>>, vector<64x16xbf16>
    %c0_1 = arith.constant 0 : index
    %c0_2 = arith.constant 0 : index
    %1 = vector.load %arg3[%c0_1, %c0_2] : memref<16x128xbf16, #tpu.memory_space<vmem>>, vector<16x128xbf16>
    %cst = arith.constant dense<0.000000e+00> : vector<64x128xf32>
    %2 = tpu.matmul %0, %1, %cst {dimension_numbers = #tpu.dot_dimension_numbers<[1], [0], [0], [1], [0, 0, 1, 1], [], []>} : vector<64x16xbf16>, vector<16x128xbf16>, vector<64x128xf32> -> vector<64x128xf32>
    %3 = arith.truncf %2 : vector<64x128xf32> to vector<64x128xbf16>
    %c0_3 = arith.constant 0 : index
    %c0_4 = arith.constant 0 : index
    %4 = vector.load %arg4[%c0_3, %c0_4] : memref<64x128xbf16, #tpu.memory_space<vmem>>, vector<64x128xbf16>
    tpu.vector_store %arg4[%c0_3, %c0_4], %3 {strides = array<i32>} : memref<64x128xbf16, #tpu.memory_space<vmem>>, vector<64x128xbf16>,
    return
  }
  func.func @transform_0(%arg0: i32, %arg1: i32) -> (i32, i32) {
    %c0_i32 = arith.constant 0 : i32
    %c0_i32_0 = arith.constant 0 : i32
    return %arg1, %c0_i32 : i32, i32
  }
  func.func @transform_1(%arg0: i32, %arg1: i32) -> (i32, i32) {
    %c0_i32 = arith.constant 0 : i32
    %c0_i32_0 = arith.constant 0 : i32
    return %c0_i32, %arg0 : i32, i32
  }
  func.func @transform_2(%arg0: i32, %arg1: i32) -> (i32, i32) {
    %c0_i32 = arith.constant 0 : i32
    return %arg1, %arg0 : i32, i32
  }
}

</mosaic_0001>

<llo_original>
// kernel: tpu_custom_call.1
$region0: #{tpu_custom_call.1}
  #allocation0 [shape = 'u32[]', space=smem, size = 0x4, offset = 0x4, fixed_abs, tag = 'smem constant byte address 0x4 - core index']
  #allocation1 [shape = 'u32[144,128]{1,0:T(1,128)}', space=vmem, size = 0x12000, scoped, tag = 'internal scratch']
  %s0 = inlined_call_operand.vmem [shape: bf16[200,16], index: 0, kind: input, shape index: {}]
  %s1 = inlined_call_operand.vmem [shape: bf16[16,300], index: 1, kind: input, shape index: {}]
  %s2 = inlined_call_operand.hbm [shape: bf16[200,300], index: 2, kind: output, shape index: {}]
  %s3 = sld [smem:[#allocation0]]
  $region82: #{tpu_custom_call.1} parent=0
    _
  %s5 = ssub.s32 1, %s3
  %s6 = scalar_select 0, %s5, %s3
  $region1: #{tpu_custom_call.1} parent=0
    #allocation2 [shape = 'u8[8192]{0}', space=vmem, size = 0x2000, scoped, tag = 'input window, operand 1']
    #allocation3 [shape = 'u8[32768]{0}', space=vmem, size = 0x8000, scoped, tag = 'output window, operand 0']
    #allocation4 [shape = 's32[2]{0}', space=sflag, size = 0x8, scoped, tag = 'scoped memory for tpu_custom_call.1']
    %7 = vsyncpa [#allocation4], 0
    %s8 = scalar_lea.sflag [#allocation4], 1
    %9 = vsyncpa %s8, 0
    loop: start=0, step=1, limit=14
    $region2: #{tpu_custom_call.1} parent=1 // loop_pre_header
      _
    $region3: #{tpu_custom_call.1} parent=1 // loop_header
      %s11 = sphi 0, %s15
      %p12 = scmp.ge.s32.totalorder %s11, 14
      %s18 = sphi 0, %s30
      %s19 = sphi 0, %s26
      %s20 = sphi 0, %s18
      %s21 = sphi 0, %s19
      %s22 = sphi 0, %s20
      %s23 = sphi 0, %s21
      %s33 = sphi 0, %s35
      %s36 = sphi 0, %s33
      %s37 = sphi 0, %s36
      %s53 = sphi 0, %s37
      %s59 = sphi 0, %s61
      %s62 = sphi 0, %s59
      %s63 = sphi 0, %s62
      %s79 = sphi 0, %s63
      %s87 = sphi 0, %s89
      %s90 = sphi 0, %s87
      %s91 = sphi 0, %s90
      %s107 = sphi 0, %s91
    $region4: #{tpu_custom_call.1} parent=1 // loop_header_branch
      %14 = sbr.rel (%p12) target = $region8
    $region5: #{tpu_custom_call.1} parent=1 // loop_body
      %s16 = ssub.s32 %s11, 1
      %s17 = ssub.s32 %s11, 2
      %s24 = sadd.s32 1, %s19
      %p25 = scmp.ge.s32.totalorder %s24, 4
      %s26 = scalar_select %p25, 0, %s24
      %s27 = sadd.s32 1, %s18
      %s28 = scalar_select %p25, %s27, %s18
      %p29 = scmp.ge.s32.totalorder %s28, 3
      %s30 = scalar_select %p29, 0, %s28
      %s31 = ssub.s32 %s19, %s26
      %p32 = scmp.eq.s32.totalorder %s31, 0
      %s34 = sadd.s32 %s33, 1
      %s35 = scalar_select %p32, %s33, %s34
      %p38 = pneg %p32
      %p39 = scmp.eq.s32.totalorder %s11, 11
      %p40 = por %p38, %p39
      %p41 = scmp.ne.s32.totalorder %s33, %s36
      %p42 = scmp.eq.s32.totalorder %s11, 0
      %p43 = por %p41, %p42
      %p44 = scmp.ne.s32.totalorder %s33, %s36
      %p45 = scmp.eq.s32.totalorder %s16, 11
      %p46 = por %p44, %p45
      %p47 = scmp.ne.s32.totalorder %s36, %s37
      %p48 = scmp.eq.s32.totalorder %s16, 0
      %p49 = por %p47, %p48
      %p50 = scmp.ne.s32.totalorder %s36, %s37
      %p51 = scmp.eq.s32.totalorder %s17, 11
      %p52 = por %p50, %p51
      %p54 = scmp.ne.s32.totalorder %s37, %s53
      %p55 = scmp.eq.s32.totalorder %s17, 0
      %p56 = por %p54, %p55
      %s57 = ssub.s32 %s18, %s30
      %p58 = scmp.eq.s32.totalorder %s57, 0
      %s60 = sadd.s32 %s59, 1
      %s61 = scalar_select %p58, %s59, %s60
      %p64 = pneg %p58
      %p65 = scmp.eq.s32.totalorder %s11, 11
      %p66 = por %p64, %p65
      %p67 = scmp.ne.s32.totalorder %s59, %s62
      %p68 = scmp.eq.s32.totalorder %s11, 0
      %p69 = por %p67, %p68
      %p70 = scmp.ne.s32.totalorder %s59, %s62
      %p71 = scmp.eq.s32.totalorder %s16, 11
      %p72 = por %p70, %p71
      %p73 = scmp.ne.s32.totalorder %s62, %s63
      %p74 = scmp.eq.s32.totalorder %s16, 0
      %p75 = por %p73, %p74
      %p76 = scmp.ne.s32.totalorder %s62, %s63
      %p77 = scmp.eq.s32.totalorder %s17, 11
      %p78 = por %p76, %p77
      %p80 = scmp.ne.s32.totalorder %s63, %s79
      %p81 = scmp.eq.s32.totalorder %s17, 0
      %p82 = por %p80, %p81
      %s83 = ssub.s32 %s19, %s26
      %s84 = ssub.s32 %s18, %s30
      %s85 = sor.u32 %s83, %s84
      %p86 = scmp.eq.s32.totalorder %s85, 0
      %s88 = sadd.s32 %s87, 1
      %s89 = scalar_select %p86, %s87, %s88
      %p92 = pneg %p86
      %p93 = scmp.eq.s32.totalorder %s11, 11
      %p94 = por %p92, %p93
      %p95 = scmp.ne.s32.totalorder %s87, %s90
      %p96 = scmp.eq.s32.totalorder %s11, 0
      %p97 = por %p95, %p96
      %p98 = scmp.ne.s32.totalorder %s87, %s90
      %p99 = scmp.eq.s32.totalorder %s16, 11
      %p100 = por %p98, %p99
      %p101 = scmp.ne.s32.totalorder %s90, %s91
      %p102 = scmp.eq.s32.totalorder %s16, 0
      %p103 = por %p101, %p102
      %p104 = scmp.ne.s32.totalorder %s90, %s91
      %p105 = scmp.eq.s32.totalorder %s17, 11
      %p106 = por %p104, %p105
      %p108 = scmp.ne.s32.totalorder %s91, %s107
      %p109 = scmp.eq.s32.totalorder %s17, 0
      %p110 = por %p108, %p109
      %p111 = scmp.le.s32.totalorder 1, %s11
      %p112 = scmp.lt.s32.totalorder %s11, 13
      %p113 = pnand %p111, %p112
      %p114 = pneg %p113
      // Predicated region
      $region9: #{tpu_custom_call.1} parent=5 // pred_check
        _
      $region10: #{tpu_custom_call.1} parent=5 // pred_check_branch
        %116 = sbr.rel (%p113) target = $region12
      $region11: #{tpu_custom_call.1} parent=5 // pred_region
        %s117 = ssub.s32 %s11, 1
      $region12: #{tpu_custom_call.1} parent=5 // pred_fallthru
        _
      %p118 = scmp.lt.s32.totalorder %s11, 12
      // Predicated region
      $region13: #{tpu_custom_call.1} parent=5 // pred_check
        %p119 = pneg %p118
      $region14: #{tpu_custom_call.1} parent=5 // pred_check_branch
        %121 = sbr.rel (%p119) target = $region16
      $region15: #{tpu_custom_call.1} parent=5 // pred_region
        // Predicated region
        $region17: #{tpu_custom_call.1} parent=15 // pred_check
          %p122 = pneg %p43
        $region18: #{tpu_custom_call.1} parent=15 // pred_check_branch
          %124 = sbr.rel (%p122) target = $region20
        $region19: #{tpu_custom_call.1} parent=15 // pred_region
          %s125 = smul.u32 8, %s19
          %s126 = ssub.s32 25, %s125
          %p127 = scmp.lt.s32.totalorder %s126, 8
          %s128 = scalar_select %p127, %s126, 8
          %s129 = smul.u32 64, %s128
          %p130 = scmp.lt.s32.totalorder %s125, 24
          %s131 = scalar_select %p130, %s125, 24
          %s132 = smul.addr %s131, 4
          %s133 = scalar_lea.vmem %s0, %s132
          %s134 = smul.u32 8, %s19
          %s135 = ssub.s32 25, %s134
          %p136 = scmp.lt.s32.totalorder %s135, 8
          %s137 = scalar_select %p136, %s135, 8
          %s138 = smul.u32 64, %s137
        $region20: #{tpu_custom_call.1} parent=15 // pred_fallthru
          _
        // Predicated region
        $region21: #{tpu_custom_call.1} parent=15 // pred_check
          %p139 = pneg %p69
        $region22: #{tpu_custom_call.1} parent=15 // pred_check_branch
          %141 = sbr.rel (%p139) target = $region24
        $region23: #{tpu_custom_call.1} parent=15 // pred_region
          %s142 = sand.u32 %s59, 1
          %s143 = sand.u32 %s59, 1
          %s144 = smul.addr %s143, 8
          %s145 = scalar_lea.vmem [#allocation2], %s144
          %s146 = smul.addr %s18, 4
          %s147 = scalar_lea.vmem %s1, %s146
          // Predicated region
          $region25: #{tpu_custom_call.1} parent=23 // pred_check
            _
          $region26: #{tpu_custom_call.1} parent=23 // pred_check_branch
            %149 = sbr.rel (0) target = $region28
          $region27: #{tpu_custom_call.1} parent=23 // pred_region
            // Predicated region
            $region29: #{tpu_custom_call.1} parent=27 // pred_check
              _
            $region30: #{tpu_custom_call.1} parent=27 // pred_check_branch
              %151 = sbr.rel target = $region32
            $region31: #{tpu_custom_call.1} parent=27 // pred_region
              // Predicated region
              $region44: #{tpu_custom_call.1} parent=31 // pred_check
                _
              $region45: #{tpu_custom_call.1} parent=31 // pred_check_branch
                %168 = sbr.rel (0) target = $region47
              $region46: #{tpu_custom_call.1} parent=31 // pred_region
                loop: start=0, step=1, limit=1
                $region48: #{tpu_custom_call.1} parent=46 // loop_pre_header
                  _
                $region49: #{tpu_custom_call.1} parent=46 // loop_header
                  %s170 = sphi 0, %s174
                  %p171 = scmp.ge.s32.totalorder %s170, 1
                  %s175 = sphi %s147, %s147
                  %s176 = sphi %s145, %s145
                $region50: #{tpu_custom_call.1} parent=46 // loop_header_branch
                  %173 = sbr.rel (%p171) target = $region54
                $region51: #{tpu_custom_call.1} parent=46 // loop_body
                  _
                $region52: #{tpu_custom_call.1} parent=46 // loop_footer
                  %s174 = sadd.s32 1, %s170
                $region53: #{tpu_custom_call.1} parent=46 // loop_footer_branch
                  %169 = sbr.rel target = $region49
                $region54: #{tpu_custom_call.1} parent=46 // loop_exit
                  _
                loop: start=0, step=1, limit=1
                $region55: #{tpu_custom_call.1} parent=46 // loop_pre_header
                  _
                $region56: #{tpu_custom_call.1} parent=46 // loop_header
                  %s179 = sphi 0, %s183
                  %p180 = scmp.ge.s32.totalorder %s179, 1
                  %s184 = sphi %s147, %s147
                  %s185 = sphi %s145, %s145
                $region57: #{tpu_custom_call.1} parent=46 // loop_header_branch
                  %182 = sbr.rel (%p180) target = $region61
                $region58: #{tpu_custom_call.1} parent=46 // loop_body
                  %v186 = vld [vmem:[%s184] sm:$0xf]
                  %187 = vst [vmem:[%s185] sm:$0xf] %v186
                  %v188 = vld [vmem:[%s184 + $0xc] sm:$0xf]
                  %189 = vst [vmem:[%s185 + $0x4] sm:$0xf] %v188
                $region59: #{tpu_custom_call.1} parent=46 // loop_footer
                  %s183 = sadd.s32 1, %s179
                $region60: #{tpu_custom_call.1} parent=46 // loop_footer_branch
                  %178 = sbr.rel target = $region56
                $region61: #{tpu_custom_call.1} parent=46 // loop_exit
                  _
              $region47: #{tpu_custom_call.1} parent=31 // pred_fallthru
                _
            $region32: #{tpu_custom_call.1} parent=27 // pred_fallthru
              _
            // Predicated region
            $region33: #{tpu_custom_call.1} parent=27 // pred_check
              _
            $region34: #{tpu_custom_call.1} parent=27 // pred_check_branch
              %153 = sbr.rel (0) target = $region36
            $region35: #{tpu_custom_call.1} parent=27 // pred_region
              loop: start=0, step=1, limit=1
              $region37: #{tpu_custom_call.1} parent=35 // loop_pre_header
                _
              $region38: #{tpu_custom_call.1} parent=35 // loop_header
                %s156 = sphi 0, %s160
                %p157 = scmp.ge.s32.totalorder %s156, 1
                %s161 = sphi %s147, %s147
                %s162 = sphi %s145, %s145
              $region39: #{tpu_custom_call.1} parent=35 // loop_header_branch
                %159 = sbr.rel (%p157) target = $region43
              $region40: #{tpu_custom_call.1} parent=35 // loop_body
                %v163 = vld [vmem:[%s161] sm:$0xf]
                %164 = vst [vmem:[%s162] sm:$0xf] %v163
                %v165 = vld [vmem:[%s161 + $0xc] sm:$0xf]
                %166 = vst [vmem:[%s162 + $0x4] sm:$0xf] %v165
              $region41: #{tpu_custom_call.1} parent=35 // loop_footer
                %s160 = sadd.s32 1, %s156
              $region42: #{tpu_custom_call.1} parent=35 // loop_footer_branch
                %155 = sbr.rel target = $region38
              $region43: #{tpu_custom_call.1} parent=35 // loop_exit
                _
            $region36: #{tpu_custom_call.1} parent=27 // pred_fallthru
              _
          $region28: #{tpu_custom_call.1} parent=23 // pred_fallthru
            _
          %190 = vnop
        $region24: #{tpu_custom_call.1} parent=15 // pred_fallthru
          _
      $region16: #{tpu_custom_call.1} parent=5 // pred_fallthru
        _
      %p191 = scmp.le.s32.totalorder 1, %s11
      %p192 = scmp.lt.s32.totalorder %s11, 13
      %p193 = pnand %p191, %p192
      %p194 = pneg %p193
      // Predicated region
      $region62: #{tpu_custom_call.1} parent=5 // pred_check
        _
      $region63: #{tpu_custom_call.1} parent=5 // pred_check_branch
        %196 = sbr.rel (%p193) target = $region65
      $region64: #{tpu_custom_call.1} parent=5 // pred_region
        %s197 = ssub.s32 %s11, 1
        %s198 = sand.u32 %s62, 1
        %s199 = sand.u32 %s62, 1
        %s200 = smul.addr %s199, 8
        %s201 = scalar_lea.vmem [#allocation2], %s200
        // Predicated region
        $region66: #{tpu_custom_call.1} parent=64 // pred_check
          %p202 = pneg %p75
        $region67: #{tpu_custom_call.1} parent=64 // pred_check_branch
          %204 = sbr.rel (%p202) target = $region69
        $region68: #{tpu_custom_call.1} parent=64 // pred_region
          _
        $region69: #{tpu_custom_call.1} parent=64 // pred_fallthru
          _
        %s205 = smul.u32 8, %s21
        %s206 = ssub.s32 25, %s205
        %p207 = scmp.lt.s32.totalorder %s206, 8
        %s208 = scalar_select %p207, %s206, 8
        %s209 = smul.u32 64, %s208
        %p210 = scmp.lt.s32.totalorder %s205, 24
        %s211 = scalar_select %p210, %s205, 24
        %s212 = smul.addr %s211, 4
        %s213 = scalar_lea.vmem %s0, %s212
        %p214 = pneg %p49
        %p215 = pneg %p46
        %s216 = sand.u32 %s62, 1
        %s217 = sand.u32 %s62, 1
        %s218 = smul.addr %s217, 8
        %s219 = scalar_lea.vmem [#allocation2], %s218
        %p220 = pneg %p75
        %p221 = pneg %p72
        %p222 = pneg %p103
        %p223 = pneg %p100
        %s224 = sand.u32 %s90, 1
        %s225 = scalar_lea.sflag [#allocation4], %s224
        %s226 = sand.u32 %s90, 1
        %s227 = smul.addr %s226, 32
        %s228 = scalar_lea.vmem [#allocation3], %s227
        %s229 = smul.u32 8, %s21
        %s230 = ssub.s32 25, %s229
        %p231 = scmp.lt.s32.totalorder %s230, 8
        %s232 = scalar_select %p231, %s230, 8
        %s233 = smul.u32 64, %s232
        %p234 = scmp.lt.s32.totalorder %s229, 24
        %s235 = scalar_select %p234, %s229, 24
        %s236 = smul.addr %s235, 4
        %s237 = scalar_lea.vmem %s0, %s236
        %s238 = smul.u32 8, %s21
        %s239 = ssub.s32 25, %s238
        %p240 = scmp.lt.s32.totalorder %s239, 8
        %s241 = scalar_select %p240, %s239, 8
        %s242 = smul.u32 64, %s241
        %s243 = smul.u32 8, %s21
        %s244 = ssub.s32 25, %s243
        %p245 = scmp.lt.s32.totalorder %s244, 8
        %s246 = scalar_select %p245, %s244, 8
        %s247 = smul.u32 64, %s246
        %v249 = vld [vmem:[%s237] sm:$0xf]
        %v250 = vld [vmem:[%s237 + $0x4] sm:$0xf]
        %v251 = vld [vmem:[%s237 + $0x8] sm:$0xf]
        %v252 = vld [vmem:[%s237 + $0xc] sm:$0xf]
        %v253 = vld [vmem:[%s237 + $0x10] sm:$0xf]
        %v254 = vld [vmem:[%s237 + $0x14] sm:$0xf]
        %v255 = vld [vmem:[%s237 + $0x18] sm:$0xf]
        %v256 = vld [vmem:[%s237 + $0x1c] sm:$0xf]
        %v257 = vld [vmem:[%s201] sm:$0xf]
        %v258 = vld [vmem:[%s201 + $0x4] sm:$0xf]
        %v267 = vunpack.c.l.b16 %v249
        %v268 = vunpack.c.l.b16 %v250
        %v269 = vunpack.c.l.b16 %v251
        %v270 = vunpack.c.l.b16 %v252
        %v271 = vunpack.c.l.b16 %v253
        %v272 = vunpack.c.l.b16 %v254
        %v273 = vunpack.c.l.b16 %v255
        %v274 = vunpack.c.l.b16 %v256
        %v275 = vpack.c.b16 %v268, %v267
        %v276 = vpack.c.b16 %v270, %v269
        %v277 = vpack.c.b16 %v272, %v271
        %v278 = vpack.c.b16 %v274, %v273
        %v281 = vunpack.c.l.b16 %v257
        %v282 = vunpack.c.l.b16 %v258
        %v283 = vpack.c.b16 %v282, %v281
        %vm285 = vcmask 130048
        %v287 = vsel %vm285, %v275, 0
        %v290 = vsel %vm285, %v276, 0
        %v293 = vsel %vm285, %v277, 0
        %v296 = vsel %vm285, %v278, 0
        %298 = vmatprep.subr.bf16.mxu0 0
        %299 = vmatpush1.bf16.msra.mxu0 %v283
        %300 = vmatprep.subr.bf16.mxu0 0
        %301 = vmatpush1.bf16.msra.mxu0 0
        %302 = vmatprep.subr.bf16.mxu0 0
        %303 = vmatpush1.bf16.msra.mxu0 0
        %304 = vmatprep.subr.bf16.mxu0 0
        %305 = vmatpush1.bf16.msra.mxu0 0
        %306 = vmatprep.subr.bf16.mxu0 0
        %307 = vmatpush1.bf16.msra.mxu0 0
        %308 = vmatprep.subr.bf16.mxu0 0
        %309 = vmatpush1.bf16.msra.mxu0 0
        %310 = vmatprep.subr.bf16.mxu0 0
        %311 = vmatpush1.bf16.msra.mxu0 0
        %312 = vmatprep.subr.bf16.mxu0 0
        %313 = vmatpush1.bf16.msra.mxu0 0
        %314 = vmatprep.subr.bf16.mxu0 0
        %315 = vmatpush1.bf16.msra.mxu0 0
        %316 = vmatprep.subr.bf16.mxu0 0
        %317 = vmatpush1.bf16.msra.mxu0 0
        %318 = vmatprep.subr.bf16.mxu0 0
        %319 = vmatpush1.bf16.msra.mxu0 0
        %320 = vmatprep.subr.bf16.mxu0 0
        %321 = vmatpush1.bf16.msra.mxu0 0
        %322 = vmatprep.subr.bf16.mxu0 0
        %323 = vmatpush1.bf16.msra.mxu0 0
        %324 = vmatprep.subr.bf16.mxu0 0
        %325 = vmatpush1.bf16.msra.mxu0 0
        %326 = vmatprep.subr.bf16.mxu0 0
        %327 = vmatpush1.bf16.msra.mxu0 0
        %328 = vmatprep.subr.bf16.mxu0 0
        %329 = vmatpush1.bf16.msra.mxu0 0
        %330 = vmatprep.mubr.bf16.mxu0 0
        %331 = vmatmul.mubr.bf16.gmra.mrb[0].mxu0 %v287
        %v332 = vpop.f32.mrb[0].mxu0
        %v333 = vadd.f32 0.0, %v332
        %v334 = vpop.f32.mrb[0].mxu0
        %v335 = vpop.f32.mrb[0].mxu0
        %v336 = vadd.f32 0.0, %v335
        %v337 = vpop.f32.mrb[0].mxu0
        %338 = vmatprep.mubr.bf16.mxu0 0
        %339 = vmatmul.mubr.bf16.gmra.mrb[0].mxu0 %v290
        %v340 = vpop.f32.mrb[0].mxu0
        %v341 = vadd.f32 0.0, %v340
        %v342 = vpop.f32.mrb[0].mxu0
        %v343 = vpop.f32.mrb[0].mxu0
        %v344 = vadd.f32 0.0, %v343
        %v345 = vpop.f32.mrb[0].mxu0
        %346 = vmatprep.mubr.bf16.mxu0 0
        %347 = vmatmul.mubr.bf16.gmra.mrb[0].mxu0 %v293
        %v348 = vpop.f32.mrb[0].mxu0
        %v349 = vadd.f32 0.0, %v348
        %v350 = vpop.f32.mrb[0].mxu0
        %v351 = vpop.f32.mrb[0].mxu0
        %v352 = vadd.f32 0.0, %v351
        %v353 = vpop.f32.mrb[0].mxu0
        %354 = vmatprep.mubr.bf16.mxu0 0
        %355 = vmatmul.mubr.bf16.gmra.mrb[0].mxu0 %v296
        %v356 = vpop.f32.mrb[0].mxu0
        %v357 = vadd.f32 0.0, %v356
        %v358 = vpop.f32.mrb[0].mxu0
        %v359 = vpop.f32.mrb[0].mxu0
        %v360 = vadd.f32 0.0, %v359
        %v361 = vpop.f32.mrb[0].mxu0
        %362 = vdwg.mxu0
        %v363 = vpack.c.bf16 %v336, %v333
        %v364 = vpack.c.bf16 %v344, %v341
        %v365 = vpack.c.bf16 %v352, %v349
        %v366 = vpack.c.bf16 %v360, %v357
        %v371 = vunpack.c.l.b16 %v363
        %v372 = vunpack.c.h.b16 %v363
        %v373 = vunpack.c.l.b16 %v364
        %v374 = vunpack.c.h.b16 %v364
        %v375 = vunpack.c.l.b16 %v365
        %v376 = vunpack.c.h.b16 %v365
        %v377 = vunpack.c.l.b16 %v366
        %v378 = vunpack.c.h.b16 %v366
        %v379 = vpack.c.b16 %v371, %v371
        %v380 = vpack.c.b16 %v372, %v372
        %v381 = vpack.c.b16 %v373, %v373
        %v382 = vpack.c.b16 %v374, %v374
        %v383 = vpack.c.b16 %v375, %v375
        %v384 = vpack.c.b16 %v376, %v376
        %v385 = vpack.c.b16 %v377, %v377
        %v386 = vpack.c.b16 %v378, %v378
        %395 = vst [vmem:[%s228] sm:$0xf] %v379
        %396 = vst [vmem:[%s228 + $0x4] sm:$0xf] %v380
        %397 = vst [vmem:[%s228 + $0x8] sm:$0xf] %v381
        %398 = vst [vmem:[%s228 + $0xc] sm:$0xf] %v382
        %399 = vst [vmem:[%s228 + $0x10] sm:$0xf] %v383
        %400 = vst [vmem:[%s228 + $0x14] sm:$0xf] %v384
        %401 = vst [vmem:[%s228 + $0x18] sm:$0xf] %v385
        %402 = vst [vmem:[%s228 + $0x1c] sm:$0xf] %v386
        %s403 = sand.u32 %s90, 1
        %s404 = scalar_lea.sflag [#allocation4], %s403
        %s405 = sand.u32 %s90, 1
        %s406 = smul.addr %s405, 32
        %s407 = scalar_lea.vmem [#allocation3], %s406
        // Predicated region
        $region70: #{tpu_custom_call.1} parent=64 // pred_check
          %p408 = pneg %p100
        $region71: #{tpu_custom_call.1} parent=64 // pred_check_branch
          %410 = sbr.rel (%p408) target = $region73
        $region72: #{tpu_custom_call.1} parent=64 // pred_region
          %s411 = smul.u32 8, %s21
          %s412 = ssub.s32 25, %s411
          %p413 = scmp.lt.s32.totalorder %s412, 8
          %s414 = scalar_select %p413, %s412, 8
          %s415 = smul.u32 64, %s414
          %s417 = ssub.s32 512, %s415
          %418 = vsyncadd %s404, %s417
          %p419 = scmp.ne.s32.totalorder 0, %s415
          %s420 = smul.addr %s411, 3
          %s421 = sadd.s32 %s20, %s420
          %s422 = smul.addr %s421, 64
          %s423 = scalar_lea.hbm %s2, %s422
          %s424 = smul.u32 4, %s414
          %s425 = sshll.u32 %s407, 4
          %s426 = int_to_ptr.vmem [resolvable:$true] %s425
          %s427 = sshll.u32 %s424, 4
          %431 = dma.vmem_to_hbm [thread:$0]  (%p419), %s426, %s427, %s423, %s404, 64, 192, 4
        $region73: #{tpu_custom_call.1} parent=64 // pred_fallthru
          _
      $region65: #{tpu_custom_call.1} parent=5 // pred_fallthru
        _
      %p432 = scmp.le.s32.totalorder 2, %s11
      // Predicated region
      $region74: #{tpu_custom_call.1} parent=5 // pred_check
        %p433 = pneg %p432
      $region75: #{tpu_custom_call.1} parent=5 // pred_check_branch
        %435 = sbr.rel (%p433) target = $region77
      $region76: #{tpu_custom_call.1} parent=5 // pred_region
        %s436 = ssub.s32 %s11, 2
        // Predicated region
        $region78: #{tpu_custom_call.1} parent=76 // pred_check
          %p437 = pneg %p106
        $region79: #{tpu_custom_call.1} parent=76 // pred_check_branch
          %439 = sbr.rel (%p437) target = $region81
        $region80: #{tpu_custom_call.1} parent=76 // pred_region
          %s440 = sand.u32 %s91, 1
          %s441 = scalar_lea.sflag [#allocation4], %s440
          %s442 = sand.u32 %s91, 1
          %s443 = smul.addr %s442, 32
          %s444 = scalar_lea.vmem [#allocation3], %s443
          %445 = dma.done %s441, 512
        $region81: #{tpu_custom_call.1} parent=76 // pred_fallthru
          _
      $region77: #{tpu_custom_call.1} parent=5 // pred_fallthru
        _
    $region6: #{tpu_custom_call.1} parent=1 // loop_footer
      %s15 = sadd.s32 1, %s11
    $region7: #{tpu_custom_call.1} parent=1 // loop_footer_branch
      %10 = sbr.rel target = $region3
    $region8: #{tpu_custom_call.1} parent=1 // loop_exit
      _
    %446 = vsyncpa [#allocation4], 1
    %s447 = scalar_lea.sflag [#allocation4], 1
    %448 = vsyncpa %s447, 1

</llo_original>
